<compile_context>
chip_gen: v6e
topology: v6e:2x2x1
jax: 0.10.0
libtpu: 0.0.40
codegen_flags: <defaults>
</compile_context>

<pallas_src>
import math

import jax
import jax.numpy as jnp
from jax.experimental import pallas as pl
from jax.experimental.pallas import tpu as pltpu


# ---------------------------------------------------------------------------
# Kernels
# ---------------------------------------------------------------------------
def router_fused_kernel(x_ref, w_ref, b_ref, o_ref):
    """One M-tile, full hidden dim: matmul + bias + softmax in one shot."""
    logits = jnp.dot(x_ref[...], w_ref[...], preferred_element_type=jnp.float32)
    logits = logits + b_ref[...]                                  # (tm, E) + (1, E)
    logits = logits - jnp.max(logits, axis=-1, keepdims=True)
    p = jnp.exp(logits)
    denom = jnp.sum(p, axis=-1, keepdims=True)
    o_ref[...] = (p / denom).astype(o_ref.dtype)                  # exact division


def _make_ktiled_kernel(tk):
    """Fallback for very large H: K-tiled accumulation, softmax in finalize."""

    def kernel(x_ref, w_ref, b_ref, o_ref, acc_ref):
        k = pl.program_id(1)

        @pl.when(k == 0)
        def _():
            acc_ref[...] = jnp.zeros_like(acc_ref)

        start = pl.multiple_of(k * tk, tk)
        acc_ref[...] += jnp.dot(
            x_ref[...],
            w_ref[pl.ds(start, tk), :],        # weight is resident; slice the K chunk
            preferred_element_type=jnp.float32,
        )

        @pl.when(k == pl.num_programs(1) - 1)
        def _():
            logits = acc_ref[...] + b_ref[...]
            logits = logits - jnp.max(logits, axis=-1, keepdims=True)
            p = jnp.exp(logits)
            o_ref[...] = (p / jnp.sum(p, axis=-1, keepdims=True)).astype(o_ref.dtype)

    return kernel


# ---------------------------------------------------------------------------
# Helpers
# ---------------------------------------------------------------------------
def _round_up(a, m):
    return ((a + m - 1) // m) * m


def _vmem_budget_bytes():
    """Per-generation VMEM budget with headroom (v7x: 64 MiB, v5e/v6e: 128 MiB)."""
    cap = 64 * 1024 * 1024  # conservative default (v7x-sized)
    try:
        info = pltpu.get_tpu_info()
        cap = int(getattr(info, "vmem_capacity_bytes", cap))
    except Exception:
        pass
    # leave headroom for compiler-internal scratch / semaphores
    return min(int(cap * 0.625), 96 * 1024 * 1024)


# ---------------------------------------------------------------------------
# Wrapper
# ---------------------------------------------------------------------------
def router_forward(x, w, b):
    """x: (..., H); w: (E, H) PyTorch nn.Linear layout; b: (E,)."""
    orig_shape = x.shape
    H = orig_shape[-1]
    E, Hw = w.shape
    assert Hw == H

    x2d = x.reshape(-1, H)                      # (M, H) — contiguous, free reshape
    M = x2d.shape[0]
    in_dtype = x2d.dtype
    itemsize = jnp.dtype(in_dtype).itemsize

    # One-time tiny host-side prep (weight is reused across all M tiles):
    w_t = jnp.asarray(w).T.astype(in_dtype)     # (H, E) — avoids per-step transpose
    b2d = jnp.asarray(b).reshape(1, E).astype(jnp.float32)

    budget = _vmem_budget_bytes()
    w_bytes = 2 * H * E * itemsize              # count 2 buffers to be safe
    out_bytes = lambda tm: 2 * tm * E * 4

    # ---- preferred path: no K grid axis (full-H row tiles of x) -------------
    tm = None
    for cand in (1024, 512, 256, 128, 64, 32, 16, 8):
        if 2 * cand * H * itemsize + w_bytes + out_bytes(cand) + 4 * E <= budget:
            tm = cand
            break

    if tm is not None:
        tm = min(tm, _round_up(M, 8))
        Mp = _round_up(M, tm)
        xp = x2d if Mp == M else jnp.pad(x2d, ((0, Mp - M), (0, 0)))

        cost = pl.CostEstimate(
            flops=2 * Mp * H * E + 5 * Mp * E,
            transcendentals=Mp * E,
            bytes_accessed=itemsize * (Mp * H + H * E) + 4 * (E + Mp * E),
        )

        out2d = pl.pallas_call(
            router_fused_kernel,
            out_shape=jax.ShapeDtypeStruct((Mp, E), jnp.float32),
            grid_spec=pltpu.PrefetchScalarGridSpec(
                num_scalar_prefetch=0,
                grid=(Mp // tm,),
                in_specs=[
                    pl.BlockSpec((tm, H), lambda i: (i, 0)),   # x row tile
                    pl.BlockSpec((H, E), lambda i: (0, 0)),    # weight: VMEM-resident
                    pl.BlockSpec((1, E), lambda i: (0, 0)),    # bias: resident
                ],
                out_specs=pl.BlockSpec((tm, E), lambda i: (i, 0)),
            ),
            compiler_params=pltpu.CompilerParams(
                dimension_semantics=("parallel",),             # megacore on v7x
                vmem_limit_bytes=budget,
            ),
            cost_estimate=cost,
        )(xp, w_t, b2d)

    # ---- fallback path: K-tiled accumulation for very large H ---------------
    else:
        tm_k = 256
        tk = None
        for cand in (4096, 2048, 1024, 512, 256, 128):
            Hp_c = _round_up(H, cand)
            need = (2 * tm_k * cand * itemsize            # x double buffer
                    + 2 * Hp_c * E * itemsize             # resident weight
                    + tm_k * E * 4                        # accumulator
                    + out_bytes(tm_k) + 4 * E)
            if need <= budget:
                tk = cand
                break
        if tk is None:
            tk, tm_k = 128, 8

        tm = min(tm_k, _round_up(M, 8))
        Mp = _round_up(M, tm)
        Hp = _round_up(H, tk)
        # Zero-padding H contributes exactly 0 to the reduction (masks ragged K).
        xp = jnp.pad(x2d, ((0, Mp - M), (0, Hp - H)))
        wp = jnp.pad(w_t, ((0, Hp - H), (0, 0)))

        cost = pl.CostEstimate(
            flops=2 * Mp * Hp * E + 5 * Mp * E,
            transcendentals=Mp * E,
            bytes_accessed=itemsize * (Mp * Hp + Hp * E) + 4 * (E + Mp * E),
        )

        out2d = pl.pallas_call(
            _make_ktiled_kernel(tk),
            out_shape=jax.ShapeDtypeStruct((Mp, E), jnp.float32),
            grid_spec=pltpu.PrefetchScalarGridSpec(
                num_scalar_prefetch=0,
                grid=(Mp // tm, Hp // tk),
                in_specs=[
                    pl.BlockSpec((tm, tk), lambda i, k: (i, k)),   # x tile
                    pl.BlockSpec((Hp, E), lambda i, k: (0, 0)),    # weight: resident
                    pl.BlockSpec((1, E), lambda i, k: (0, 0)),     # bias: resident
                ],
                out_specs=pl.BlockSpec((tm, E), lambda i, k: (i, 0)),
                scratch_shapes=[pltpu.VMEM((tm, E), jnp.float32)],
            ),
            compiler_params=pltpu.CompilerParams(
                dimension_semantics=("parallel", "arbitrary"),
                vmem_limit_bytes=budget,
            ),
            cost_estimate=cost,
        )(xp, wp, b2d)

    if out2d.shape[0] != M:
        out2d = out2d[:M]
    return out2d.reshape(*orig_shape[:-1], E)


# ---------------------------------------------------------------------------
# Pure-JAX reference (mirrors the PyTorch forward) for verification
# ---------------------------------------------------------------------------
def router_forward_ref(x, w, b):
    logits = x @ w.T + b
    return jax.nn.softmax(logits, axis=-1)


if __name__ == "__main__":
    # config: hidden_size=32, num_experts=8 (num_experts_per_token unused in forward)
    B, S, H, E = 2, 8, 32, 8

    key = jax.random.PRNGKey(0)
    kx, kw, kb = jax.random.split(key, 3)
    x = jax.random.normal(kx, (B, S, H), dtype=jnp.float32)

    # xavier_uniform_ on nn.Linear(H, E).weight  -> shape (E, H)
    xav = math.sqrt(6.0 / (H + E))
    w = jax.random.uniform(kw, (E, H), dtype=jnp.float32, minval=-xav, maxval=xav)
    # nn.Linear default bias init: U(-1/sqrt(H), 1/sqrt(H))
    bb = 1.0 / math.sqrt(H)
    b = jax.random.uniform(kb, (E,), dtype=jnp.float32, minval=-bb, maxval=bb)

    out = jax.block_until_ready(router_forward(x, w, b))
    ref = router_forward_ref(x, w, b)

    assert out.shape == (B, S, E)
    assert jnp.allclose(out, ref, atol=1e-4, rtol=1e-4)
    assert jnp.allclose(jnp.sum(out, axis=-1), 1.0, atol=1e-4)

    print("KERNEL_OK")
</pallas_src>

<mosaic_0001>
module attributes {stable_mosaic.version = 11 : i64} {
  func.func @router_fused_kernel(%arg0: i32, %arg1: memref<16x32xf32, #tpu.memory_space<vmem>>, %arg2: memref<32x8xf32, #tpu.memory_space<vmem>>, %arg3: memref<1x8xf32, #tpu.memory_space<vmem>>, %arg4: memref<16x8xf32, #tpu.memory_space<vmem>>) attributes {dimension_semantics = [#tpu.dimension_semantics<parallel>], iteration_bounds = array<i64: 1>, scalar_prefetch = 0 : i64, scratch_operands = 0 : i64, tpu.core_type = #tpu.core_type<tc>, window_params = [{transform_indices = @transform_0, window_bounds = array<i64: 16, 32>}, {pipeline_mode = #tpu.pipeline_mode<synchronous>, transform_indices = @transform_1, window_bounds = array<i64: 32, 8>}, {pipeline_mode = #tpu.pipeline_mode<synchronous>, transform_indices = @transform_2, window_bounds = array<i64: 1, 8>}, {transform_indices = @transform_3, window_bounds = array<i64: 16, 8>}]} {
    %c0 = arith.constant 0 : index
    %c0_0 = arith.constant 0 : index
    %0 = vector.load %arg1[%c0, %c0_0] : memref<16x32xf32, #tpu.memory_space<vmem>>, vector<16x32xf32>
    %c0_1 = arith.constant 0 : index
    %c0_2 = arith.constant 0 : index
    %1 = vector.load %arg2[%c0_1, %c0_2] : memref<32x8xf32, #tpu.memory_space<vmem>>, vector<32x8xf32>
    %cst = arith.constant dense<0.000000e+00> : vector<16x8xf32>
    %2 = tpu.matmul %0, %1, %cst {dimension_numbers = #tpu.dot_dimension_numbers<[1], [0], [0], [1], [0, 0, 1, 1], [], []>} : vector<16x32xf32>, vector<32x8xf32>, vector<16x8xf32> -> vector<16x8xf32>
    %c0_3 = arith.constant 0 : index
    %c0_4 = arith.constant 0 : index
    %3 = vector.load %arg3[%c0_3, %c0_4] : memref<1x8xf32, #tpu.memory_space<vmem>>, vector<1x8xf32>
    %4 = vector.broadcast %3 : vector<1x8xf32> to vector<16x8xf32>
    %5 = arith.addf %2, %4 : vector<16x8xf32>
    %cst_5 = arith.constant dense<0xFF800000> : vector<16xf32>
    %6 = vector.multi_reduction <maximumf>, %5, %cst_5 [1] : vector<16x8xf32> to vector<16xf32>
    %7 = vector.shape_cast %6 : vector<16xf32> to vector<16x1xf32>
    %8 = vector.broadcast %7 : vector<16x1xf32> to vector<16x8xf32>
    %9 = arith.subf %5, %8 : vector<16x8xf32>
    %10 = math.exp %9 : vector<16x8xf32>
    %cst_6 = arith.constant dense<0.000000e+00> : vector<16xf32>
    %11 = vector.multi_reduction <add>, %10, %cst_6 [1] : vector<16x8xf32> to vector<16xf32>
    %12 = vector.shape_cast %11 : vector<16xf32> to vector<16x1xf32>
    %13 = vector.broadcast %12 : vector<16x1xf32> to vector<16x8xf32>
    %14 = arith.divf %10, %13 : vector<16x8xf32>
    %c0_7 = arith.constant 0 : index
    %c0_8 = arith.constant 0 : index
    %15 = vector.load %arg4[%c0_7, %c0_8] : memref<16x8xf32, #tpu.memory_space<vmem>>, vector<16x8xf32>
    tpu.vector_store %arg4[%c0_7, %c0_8], %14 {strides = array<i32>} : memref<16x8xf32, #tpu.memory_space<vmem>>, vector<16x8xf32>,
    return
  }
  func.func @transform_0(%arg0: i32) -> (i32, i32) {
    %c0_i32 = arith.constant 0 : i32
    %c0_i32_0 = arith.constant 0 : i32
    return %arg0, %c0_i32 : i32, i32
  }
  func.func @transform_1(%arg0: i32) -> (i32, i32) {
    %c0_i32 = arith.constant 0 : i32
    %c0_i32_0 = arith.constant 0 : i32
    %c0_i32_1 = arith.constant 0 : i32
    return %c0_i32, %c0_i32_0 : i32, i32
  }
  func.func @transform_2(%arg0: i32) -> (i32, i32) {
    %c0_i32 = arith.constant 0 : i32
    %c0_i32_0 = arith.constant 0 : i32
    %c0_i32_1 = arith.constant 0 : i32
    return %c0_i32, %c0_i32_0 : i32, i32
  }
  func.func @transform_3(%arg0: i32) -> (i32, i32) {
    %c0_i32 = arith.constant 0 : i32
    %c0_i32_0 = arith.constant 0 : i32
    return %arg0, %c0_i32 : i32, i32
  }
}

</mosaic_0001>

<llo_original>
// kernel: tpu_custom_call.1
$region0: #{tpu_custom_call.1}
  #allocation0 [shape = 'u32[]', space=smem, size = 0x4, offset = 0x4, fixed_abs, tag = 'smem constant byte address 0x4 - core index']
  #allocation1 [shape = 'u32[144,128]{1,0:T(1,128)}', space=vmem, size = 0x12000, scoped, tag = 'internal scratch']
  %s0 = inlined_call_operand.vmem [shape: f32[16,32], index: 0, kind: input, shape index: {}]
  %s1 = inlined_call_operand.vmem [shape: f32[32,8], index: 1, kind: input, shape index: {}]
  %s2 = inlined_call_operand.vmem [shape: f32[1,8], index: 2, kind: input, shape index: {}]
  %s3 = inlined_call_operand.vmem [shape: f32[16,8], index: 3, kind: output, shape index: {}]
  %s4 = sld [smem:[#allocation0]]
  $region22: #{tpu_custom_call.1} parent=0
    _
  %s6 = ssub.s32 1, %s4
  %s7 = scalar_select 0, %s6, %s4
  // Predicated region
  $region2: #{tpu_custom_call.1} parent=0 // pred_check
    _
  $region3: #{tpu_custom_call.1} parent=0 // pred_check_branch
    %9 = sbr.rel (0) target = $region5
  $region4: #{tpu_custom_call.1} parent=0 // pred_region
    _
  $region5: #{tpu_custom_call.1} parent=0 // pred_fallthru
    _
  // Predicated region
  $region6: #{tpu_custom_call.1} parent=0 // pred_check
    _
  $region7: #{tpu_custom_call.1} parent=0 // pred_check_branch
    %11 = sbr.rel (0) target = $region9
  $region8: #{tpu_custom_call.1} parent=0 // pred_region
    _
  $region9: #{tpu_custom_call.1} parent=0 // pred_fallthru
    _
  // Predicated region
  $region10: #{tpu_custom_call.1} parent=0 // pred_check
    _
  $region11: #{tpu_custom_call.1} parent=0 // pred_check_branch
    %13 = sbr.rel (0) target = $region13
  $region12: #{tpu_custom_call.1} parent=0 // pred_region
    _
  $region13: #{tpu_custom_call.1} parent=0 // pred_fallthru
    _
  %v14 = vld [vmem:[%s0] sm:$0xff]
  %v15 = vld [vmem:[%s0 + $0x8] sm:$0xff]
  %v16 = vld [vmem:[%s1] sm:$0xff]
  %v17 = vld [vmem:[%s1 + $0x8] sm:$0xff]
  %v18 = vld [vmem:[%s1 + $0x10] sm:$0xff]
  %v19 = vld [vmem:[%s1 + $0x18] sm:$0xff]
  %v20 = vld [vmem:[%s2] sm:$0x1]
  %v22 = vlaneseq
  %v23 = vshrl.u32 %v22, 7
  %v24 = vsub.s32 0, %v23
  %v25 = vrot.slane %v20, %v24
  %vm27 = vcmask 261120
  %v29 = vsel %vm27, %v14, 0
  %v32 = vsel %vm27, %v15, 0
  %34 = vmatprep.subr.mxu0 0.0
  %35 = vmatpush1.msra.mxu0 0.0
  %36 = vmatprep.subr.mxu0 0.0
  %37 = vmatpush1.msra.mxu0 0.0
  %38 = vmatprep.subr.mxu0 0.0
  %39 = vmatpush1.msra.mxu0 0.0
  %40 = vmatprep.subr.mxu0 0.0
  %41 = vmatpush1.msra.mxu0 0.0
  %42 = vmatprep.subr.mxu0 0.0
  %43 = vmatpush1.msra.mxu0 0.0
  %44 = vmatprep.subr.mxu0 0.0
  %45 = vmatpush1.msra.mxu0 0.0
  %46 = vmatprep.subr.mxu0 0.0
  %47 = vmatpush1.msra.mxu0 0.0
  %48 = vmatprep.subr.mxu0 0.0
  %49 = vmatpush1.msra.mxu0 0.0
  %50 = vmatprep.subr.mxu0 0.0
  %51 = vmatpush1.msra.mxu0 0.0
  %52 = vmatprep.subr.mxu0 0.0
  %53 = vmatpush1.msra.mxu0 0.0
  %54 = vmatprep.subr.mxu0 0.0
  %55 = vmatpush1.msra.mxu0 0.0
  %56 = vmatprep.subr.mxu0 0.0
  %57 = vmatpush1.msra.mxu0 0.0
  %58 = vmatprep.subr.mxu0 0.0
  %59 = vmatpush1.msra.mxu0 %v19
  %60 = vmatprep.subr.mxu0 0.0
  %61 = vmatpush1.msra.mxu0 %v18
  %62 = vmatprep.subr.mxu0 0.0
  %63 = vmatpush1.msra.mxu0 %v17
  %64 = vmatprep.subr.mxu0 0.0
  %65 = vmatpush1.msra.mxu0 %v16
  %66 = vmatprep.subr.mxu0 0.0
  %67 = vmatpush2.msra.mxu0 0.0
  %68 = vmatprep.subr.mxu0 0.0
  %69 = vmatpush2.msra.mxu0 0.0
  %70 = vmatprep.subr.mxu0 0.0
  %71 = vmatpush2.msra.mxu0 0.0
  %72 = vmatprep.subr.mxu0 0.0
  %73 = vmatpush2.msra.mxu0 0.0
  %74 = vmatprep.subr.mxu0 0.0
  %75 = vmatpush2.msra.mxu0 0.0
  %76 = vmatprep.subr.mxu0 0.0
  %77 = vmatpush2.msra.mxu0 0.0
  %78 = vmatprep.subr.mxu0 0.0
  %79 = vmatpush2.msra.mxu0 0.0
  %80 = vmatprep.subr.mxu0 0.0
  %81 = vmatpush2.msra.mxu0 0.0
  %82 = vmatprep.subr.mxu0 0.0
  %83 = vmatpush2.msra.mxu0 0.0
  %84 = vmatprep.subr.mxu0 0.0
  %85 = vmatpush2.msra.mxu0 0.0
  %86 = vmatprep.subr.mxu0 0.0
  %87 = vmatpush2.msra.mxu0 0.0
  %88 = vmatprep.subr.mxu0 0.0
  %89 = vmatpush2.msra.mxu0 0.0
  %90 = vmatprep.subr.mxu0 0.0
  %91 = vmatpush2.msra.mxu0 0.0
  %92 = vmatprep.subr.mxu0 0.0
  %93 = vmatpush2.msra.mxu0 0.0
  %94 = vmatprep.subr.mxu0 0.0
  %95 = vmatpush2.msra.mxu0 0.0
  %96 = vmatprep.subr.mxu0 0.0
  %97 = vmatpush2.msra.mxu0 0.0
  %98 = vmatprep.mubr.f32.mxu0 0.0
  %99 = vmatmul.mubr.f32.gmra.mxu0 %v29
  %v100 = vpop.f32.mrf.mxu0
  %v101 = vadd.f32 %v25, %v100
  %v102 = vpop.f32.mrf.mxu0
  %103 = vmatprep.mubr.f32.mxu0 0.0
  %104 = vmatmul.mubr.f32.gmra.mxu0 %v32
  %v105 = vpop.f32.mrf.mxu0
  %v106 = vadd.f32 %v25, %v105
  %v107 = vpop.f32.mrf.mxu0
  %108 = vdwg.mxu0
  %vm109 = vcmask 64512
  %v110 = vsel %vm109, %v101, -inf
  %111 = vmax.xlane.f32.xlu0 %v110
  %v112 = vpop.xlane.xlu0 %111
  %v113 = vsel %vm109, %v106, -inf
  %114 = vmax.xlane.f32.xlu0 %v113
  %v115 = vpop.xlane.xlu0 %114
  %v116 = vsub.f32 %v101, %v112
  %v117 = vsub.f32 %v106, %v115
  %v118 = vmul.f32 %v116, 1.442695
  %v119 = vpow.pop %v118
  %v120 = vmul.f32 %v117, 1.442695
  %v121 = vpow.pop %v120
  %v122 = vsel %vm109, %v119, 0.0
  %123 = vadd.xlane.f32.xlu0 %v122
  %v124 = vpop.xlane.xlu0 %123
  %v125 = vsel %vm109, %v121, 0.0
  %126 = vadd.xlane.f32.xlu0 %v125
  %v127 = vpop.xlane.xlu0 %126
  %v128 = vrcp.pop %v124
  %v129 = vmul.f32 %v119, %v128
  %v130 = vrcp.pop %v127
  %v131 = vmul.f32 %v121, %v130
  %132 = vst.msk [vmem:[%s3] sm:$0xff] %vm109, %v129
  %133 = vst.msk [vmem:[%s3 + $0x8] sm:$0xff] %vm109, %v131
  // Predicated region
  $region14: #{tpu_custom_call.1} parent=0 // pred_check
    _
  $region15: #{tpu_custom_call.1} parent=0 // pred_check_branch
    %135 = sbr.rel (0) target = $region17
  $region16: #{tpu_custom_call.1} parent=0 // pred_region
    _
  $region17: #{tpu_custom_call.1} parent=0 // pred_fallthru
    _
  // Predicated region
  $region18: #{tpu_custom_call.1} parent=0 // pred_check
    _
  $region19: #{tpu_custom_call.1} parent=0 // pred_check_branch
    %137 = sbr.rel (0) target = $region21
  $region20: #{tpu_custom_call.1} parent=0 // pred_region
    _
  $region21: #{tpu_custom_call.1} parent=0 // pred_fallthru
    _

</llo_original>
